<compile_context>
chip_gen: v7x
topology: tpu7x:2x2x1
jax: 0.10.0
libtpu: 0.0.40
codegen_flags: <defaults>
</compile_context>

<pallas_src>
import functools

import numpy as np
import jax
import jax.numpy as jnp
from jax.experimental import pallas as pl
from jax.experimental.pallas import tpu as pltpu

BN_EPS = 1e-3
_VMEM_LIMIT = 32 * 1024 * 1024


def _round_up(x, m):
    return (x + m - 1) // m * m


# ----------------------------------------------------------------------------
# Pallas kernel 1: fused (im2col) matmul + folded-BN bias + ReLU
#   bf16 inputs, f32 accumulate (MXU), f32 bias+ReLU epilogue.
#   Grid is (M tiles, N tiles); each step contracts the FULL K.
# ----------------------------------------------------------------------------
def _mm_kernel(a_ref, b_ref, bias_ref, o_ref):
    acc = jnp.dot(a_ref[...], b_ref[...], preferred_element_type=jnp.float32)
    o_ref[...] = jnp.maximum(acc + bias_ref[...], 0.0).astype(o_ref.dtype)


@functools.lru_cache(maxsize=None)
def _build_mm(Mp, Kp, Np, TM, TN):
    grid = (Mp // TM, Np // TN)
    call = pl.pallas_call(
        _mm_kernel,
        out_shape=jax.ShapeDtypeStruct((Mp, Np), jnp.float32),
        grid_spec=pltpu.PrefetchScalarGridSpec(
            num_scalar_prefetch=0,
            grid=grid,
            in_specs=[
                pl.BlockSpec((TM, Kp), lambda i, j: (i, 0)),   # activations
                pl.BlockSpec((Kp, TN), lambda i, j: (0, j)),   # folded weight
                pl.BlockSpec((1, TN), lambda i, j: (0, j)),    # folded bias
            ],
            out_specs=pl.BlockSpec((TM, TN), lambda i, j: (i, j)),
        ),
        compiler_params=pltpu.CompilerParams(
            dimension_semantics=("parallel", "parallel"),
            vmem_limit_bytes=_VMEM_LIMIT),
    )
    return jax.jit(call)


def _matmul_bias_relu(a, f):
    """relu(a @ w_f + b_f) for a pre-folded conv `f`.  a: (M, K) bf16."""
    M, K = a.shape
    Kp, Np = f['w'].shape
    # N tile: largest of 512/384/256/128 dividing the pre-padded Np.
    TN = next(t for t in (512, 384, 256, 128) if Np % t == 0)
    # M tile: single full tile for small M, else 256 (>=2 parallel tiles).
    Mp0 = _round_up(M, 8)
    if Mp0 <= 256:
        TM, Mp = Mp0, Mp0
    else:
        TM = 256
        Mp = _round_up(M, TM)
    pad_m, pad_k = Mp - M, Kp - K
    if pad_m or pad_k:
        a = jnp.pad(a, ((0, pad_m), (0, pad_k)))
    out = _build_mm(Mp, Kp, Np, TM, TN)(a, f['w'], f['b'])
    return out[:M, :f['cout']]


# ----------------------------------------------------------------------------
# Pallas kernel 2: window reduction (max-pool / avg-pool / global avg-pool),
#   tiled over rows and channels.
# ----------------------------------------------------------------------------
def _pool_kernel(x_ref, o_ref, *, is_max, inv_denom):
    x = x_ref[...]                              # (KK, tm, tc)
    if is_max:
        o_ref[...] = jnp.max(x, axis=0)
    else:
        o_ref[...] = (jnp.sum(x.astype(jnp.float32), axis=0)
                      * inv_denom).astype(o_ref.dtype)


@functools.lru_cache(maxsize=None)
def _build_pool(KK, Mp, Cp, tm, tc, is_max, inv_denom):
    kern = functools.partial(_pool_kernel, is_max=is_max, inv_denom=inv_denom)
    call = pl.pallas_call(
        kern,
        out_shape=jax.ShapeDtypeStruct((Mp, Cp), jnp.float32),
        grid_spec=pltpu.PrefetchScalarGridSpec(
            num_scalar_prefetch=0,
            grid=(Mp // tm, Cp // tc),
            in_specs=[pl.BlockSpec((KK, tm, tc), lambda i, j: (0, i, j))],
            out_specs=pl.BlockSpec((tm, tc), lambda i, j: (i, j)),
        ),
        compiler_params=pltpu.CompilerParams(
            dimension_semantics=("parallel", "parallel"),
            vmem_limit_bytes=_VMEM_LIMIT),
    )
    return jax.jit(call)


def _pool_windows(stacked, is_max, denom):
    """stacked: (KK, M, C) f32 -> (M, C) reduced over the KK window taps."""
    KK, M, C = stacked.shape
    Cp = _round_up(C, 128)
    tc = next(t for t in (512, 384, 256, 128) if Cp % t == 0)
    Mp0 = _round_up(M, 8)
    if Mp0 <= 512:
        tm, Mp = Mp0, Mp0
    else:
        tm = 128
        Mp = _round_up(M, tm)
    xp = jnp.pad(stacked, ((0, 0), (0, Mp - M), (0, Cp - C)))
    out = _build_pool(KK, Mp, Cp, tm, tc, bool(is_max), float(1.0 / denom))(xp)
    return out[:M, :C]


# ----------------------------------------------------------------------------
# Plain-JAX glue: window extraction (im2col), conv / pooling wrappers
# ----------------------------------------------------------------------------
def _extract_windows(x, kh, kw, stride, padding):
    n, h, w, c = x.shape
    sh, sw = stride
    ph, pw = padding
    xp = jnp.pad(x, ((0, 0), (ph, ph), (pw, pw), (0, 0)))
    ho = (h + 2 * ph - kh) // sh + 1
    wo = (w + 2 * pw - kw) // sw + 1
    cols = []
    for i in range(kh):
        for j in range(kw):
            cols.append(xp[:, i:i + (ho - 1) * sh + 1:sh,
                           j:j + (wo - 1) * sw + 1:sw, :])
    return cols, (n, ho, wo)


def conv_bn_relu(x, f, stride=(1, 1), padding=(0, 0)):
    """BasicConv2d with BN pre-folded into `f` (bf16 weight, f32 bias)."""
    kh, kw = f['kh'], f['kw']
    n, h, w_, c = x.shape
    xb = x.astype(jnp.bfloat16)                         # bf16 before im2col
    if kh == 1 and kw == 1 and stride == (1, 1) and padding == (0, 0):
        a = xb.reshape(n * h * w_, c)
        ho, wo = h, w_
    else:
        cols, (n, ho, wo) = _extract_windows(xb, kh, kw, stride, padding)
        a = jnp.concatenate(cols, axis=-1).reshape(n * ho * wo, kh * kw * c)
    out = _matmul_bias_relu(a, f)
    return out.reshape(n, ho, wo, f['cout'])


def conv1x1_fused(x, f):
    """Fused same-input 1x1 branch convs; returns per-branch outputs."""
    y = conv_bn_relu(x, f)
    if len(f['couts']) == 1:
        return [y]
    idx = [int(i) for i in np.cumsum(f['couts'][:-1])]
    return jnp.split(y, idx, axis=-1)


def max_pool_3x3_s2(x):
    cols, (n, ho, wo) = _extract_windows(x, 3, 3, (2, 2), (0, 0))
    c = x.shape[-1]
    stacked = jnp.stack([col.reshape(n * ho * wo, c) for col in cols], axis=0)
    out = _pool_windows(stacked, is_max=True, denom=1.0)
    return out.reshape(n, ho, wo, c)


def avg_pool_3x3_s1_p1(x):
    # F.avg_pool2d default count_include_pad=True -> always divide by 9.
    cols, (n, ho, wo) = _extract_windows(x, 3, 3, (1, 1), (1, 1))
    c = x.shape[-1]
    stacked = jnp.stack([col.reshape(n * ho * wo, c) for col in cols], axis=0)
    out = _pool_windows(stacked, is_max=False, denom=9.0)
    return out.reshape(n, ho, wo, c)


def global_avg_pool(x):
    n, h, w, c = x.shape
    stacked = jnp.transpose(x.reshape(n, h * w, c), (1, 0, 2))   # (HW, N, C)
    return _pool_windows(stacked, is_max=False, denom=float(h * w))


# ----------------------------------------------------------------------------
# Deterministic raw parameter construction (InceptionV3 architecture)
# ----------------------------------------------------------------------------
class ParamGen:
    def __init__(self, key):
        self.key = key
        self.count = 0

    def conv_bn(self, cin, cout, kh, kw):
        k = jax.random.fold_in(self.key, self.count)
        self.count += 1
        kw_, kg, kb, km, kv = jax.random.split(k, 5)
        fan_in = cin * kh * kw
        w = jax.random.normal(kw_, (kh, kw, cin, cout),
                              jnp.float32) * np.sqrt(2.0 / fan_in)
        gamma = 1.0 + 0.1 * jax.random.normal(kg, (cout,), jnp.float32)
        beta = 0.1 * jax.random.normal(kb, (cout,), jnp.float32)
        mean = 0.1 * jax.random.normal(km, (cout,), jnp.float32)
        var = 1.0 + 0.1 * jax.random.uniform(kv, (cout,), jnp.float32)
        return dict(w=w, gamma=gamma, beta=beta, mean=mean, var=var)


def make_inception_params(key):
    g = ParamGen(key)
    P = {}
    P['Conv2d_1a_3x3'] = g.conv_bn(3, 32, 3, 3)
    P['Conv2d_2a_3x3'] = g.conv_bn(32, 32, 3, 3)
    P['Conv2d_2b_3x3'] = g.conv_bn(32, 64, 3, 3)
    P['Conv2d_3b_1x1'] = g.conv_bn(64, 80, 1, 1)
    P['Conv2d_4a_3x3'] = g.conv_bn(80, 192, 3, 3)

    def inception_a(cin, pool_features):
        return dict(
            branch1x1=g.conv_bn(cin, 64, 1, 1),
            branch5x5_1=g.conv_bn(cin, 48, 1, 1),
            branch5x5_2=g.conv_bn(48, 64, 5, 5),
            branch3x3dbl_1=g.conv_bn(cin, 64, 1, 1),
            branch3x3dbl_2=g.conv_bn(64, 96, 3, 3),
            branch3x3dbl_3=g.conv_bn(96, 96, 3, 3),
            branch_pool=g.conv_bn(cin, pool_features, 1, 1))

    P['Mixed_5b'] = inception_a(192, 32)
    P['Mixed_5c'] = inception_a(256, 64)
    P['Mixed_5d'] = inception_a(288, 64)

    def inception_b(cin):
        return dict(
            branch3x3=g.conv_bn(cin, 384, 3, 3),
            branch3x3dbl_1=g.conv_bn(cin, 64, 1, 1),
            branch3x3dbl_2=g.conv_bn(64, 96, 3, 3),
            branch3x3dbl_3=g.conv_bn(96, 96, 3, 3))

    P['Mixed_6a'] = inception_b(288)

    def inception_c(cin, c7):
        return dict(
            branch1x1=g.conv_bn(cin, 192, 1, 1),
            branch7x7_1=g.conv_bn(cin, c7, 1, 1),
            branch7x7_2=g.conv_bn(c7, c7, 1, 7),
            branch7x7_3=g.conv_bn(c7, 192, 7, 1),
            branch7x7dbl_1=g.conv_bn(cin, c7, 1, 1),
            branch7x7dbl_2=g.conv_bn(c7, c7, 7, 1),
            branch7x7dbl_3=g.conv_bn(c7, c7, 1, 7),
            branch7x7dbl_4=g.conv_bn(c7, c7, 7, 1),
            branch7x7dbl_5=g.conv_bn(c7, 192, 1, 7),
            branch_pool=g.conv_bn(cin, 192, 1, 1))

    P['Mixed_6b'] = inception_c(768, 128)
    P['Mixed_6c'] = inception_c(768, 160)
    P['Mixed_6d'] = inception_c(768, 160)
    P['Mixed_6e'] = inception_c(768, 192)

    def inception_d(cin):
        return dict(
            branch3x3_1=g.conv_bn(cin, 192, 1, 1),
            branch3x3_2=g.conv_bn(192, 320, 3, 3),
            branch7x7x3_1=g.conv_bn(cin, 192, 1, 1),
            branch7x7x3_2=g.conv_bn(192, 192, 1, 7),
            branch7x7x3_3=g.conv_bn(192, 192, 7, 1),
            branch7x7x3_4=g.conv_bn(192, 192, 3, 3))

    P['Mixed_7a'] = inception_d(768)

    def inception_e(cin):
        return dict(
            branch1x1=g.conv_bn(cin, 320, 1, 1),
            branch3x3_1=g.conv_bn(cin, 384, 1, 1),
            branch3x3_2a=g.conv_bn(384, 384, 1, 3),
            branch3x3_2b=g.conv_bn(384, 384, 3, 1),
            branch3x3dbl_1=g.conv_bn(cin, 448, 1, 1),
            branch3x3dbl_2=g.conv_bn(448, 384, 3, 3),
            branch3x3dbl_3a=g.conv_bn(384, 384, 1, 3),
            branch3x3dbl_3b=g.conv_bn(384, 384, 3, 1),
            branch_pool=g.conv_bn(cin, 192, 1, 1))

    P['Mixed_7b'] = inception_e(1280)
    P['Mixed_7c'] = inception_e(2048)
    return P


# ----------------------------------------------------------------------------
# One-time BN folding, branch fusion, padding & bf16 cast (hoisted off the
# per-forward path).
# ----------------------------------------------------------------------------
def _fold_raw(p):
    w = p['w']
    kh, kw, cin, cout = w.shape
    scale = p['gamma'] * jax.lax.rsqrt(p['var'] + BN_EPS)
    w_f = (w * scale).reshape(kh * kw * cin, cout)
    b_f = p['beta'] - p['mean'] * scale
    return dict(w=w_f, b=b_f, kh=kh, kw=kw, cin=cin,
                cout=int(cout), couts=(int(cout),))


def _fuse(folded_list):
    """Concatenate same-input 1x1 convs along cout (single lane-dense matmul)."""
    return dict(
        w=jnp.concatenate([f['w'] for f in folded_list], axis=1),
        b=jnp.concatenate([f['b'] for f in folded_list]),
        kh=1, kw=1, cin=folded_list[0]['cin'],
        cout=sum(f['cout'] for f in folded_list),
        couts=tuple(f['cout'] for f in folded_list))


def _finalize(f):
    """Pad K to mult-of-8 and N to mult-of-128; cast weight to bf16."""
    K, N = f['w'].shape
    Kp = _round_up(K, 8)
    Np = _round_up(N, 128)
    out = dict(f)
    out['w'] = jnp.pad(f['w'], ((0, Kp - K), (0, Np - N))).astype(jnp.bfloat16)
    out['b'] = jnp.pad(f['b'].reshape(1, N),
                       ((0, 0), (0, Np - N))).astype(jnp.float32)
    return out


def fold_inception_params(P):
    FP = {}
    for name in ('Conv2d_1a_3x3', 'Conv2d_2a_3x3', 'Conv2d_2b_3x3',
                 'Conv2d_3b_1x1', 'Conv2d_4a_3x3'):
        FP[name] = _finalize(_fold_raw(P[name]))

    def fold_a(p):
        return dict(
            fused_in=_finalize(_fuse([_fold_raw(p['branch1x1']),
                                      _fold_raw(p['branch5x5_1']),
                                      _fold_raw(p['branch3x3dbl_1'])])),
            branch5x5_2=_finalize(_fold_raw(p['branch5x5_2'])),
            branch3x3dbl_2=_finalize(_fold_raw(p['branch3x3dbl_2'])),
            branch3x3dbl_3=_finalize(_fold_raw(p['branch3x3dbl_3'])),
            branch_pool=_finalize(_fold_raw(p['branch_pool'])))
    for name in ('Mixed_5b', 'Mixed_5c', 'Mixed_5d'):
        FP[name] = fold_a(P[name])

    p = P['Mixed_6a']
    FP['Mixed_6a'] = dict(
        branch3x3=_finalize(_fold_raw(p['branch3x3'])),
        branch3x3dbl_1=_finalize(_fold_raw(p['branch3x3dbl_1'])),
        branch3x3dbl_2=_finalize(_fold_raw(p['branch3x3dbl_2'])),
        branch3x3dbl_3=_finalize(_fold_raw(p['branch3x3dbl_3'])))

    def fold_c(p):
        return dict(
            fused_in=_finalize(_fuse([_fold_raw(p['branch1x1']),
                                      _fold_raw(p['branch7x7_1']),
                                      _fold_raw(p['branch7x7dbl_1'])])),
            branch7x7_2=_finalize(_fold_raw(p['branch7x7_2'])),
            branch7x7_3=_finalize(_fold_raw(p['branch7x7_3'])),
            branch7x7dbl_2=_finalize(_fold_raw(p['branch7x7dbl_2'])),
            branch7x7dbl_3=_finalize(_fold_raw(p['branch7x7dbl_3'])),
            branch7x7dbl_4=_finalize(_fold_raw(p['branch7x7dbl_4'])),
            branch7x7dbl_5=_finalize(_fold_raw(p['branch7x7dbl_5'])),
            branch_pool=_finalize(_fold_raw(p['branch_pool'])))
    for name in ('Mixed_6b', 'Mixed_6c', 'Mixed_6d', 'Mixed_6e'):
        FP[name] = fold_c(P[name])

    p = P['Mixed_7a']
    FP['Mixed_7a'] = dict(
        fused_in=_finalize(_fuse([_fold_raw(p['branch3x3_1']),
                                  _fold_raw(p['branch7x7x3_1'])])),
        branch3x3_2=_finalize(_fold_raw(p['branch3x3_2'])),
        branch7x7x3_2=_finalize(_fold_raw(p['branch7x7x3_2'])),
        branch7x7x3_3=_finalize(_fold_raw(p['branch7x7x3_3'])),
        branch7x7x3_4=_finalize(_fold_raw(p['branch7x7x3_4'])))

    def fold_e(p):
        return dict(
            fused_in=_finalize(_fuse([_fold_raw(p['branch1x1']),
                                      _fold_raw(p['branch3x3_1']),
                                      _fold_raw(p['branch3x3dbl_1'])])),
            branch3x3_2a=_finalize(_fold_raw(p['branch3x3_2a'])),
            branch3x3_2b=_finalize(_fold_raw(p['branch3x3_2b'])),
            branch3x3dbl_2=_finalize(_fold_raw(p['branch3x3dbl_2'])),
            branch3x3dbl_3a=_finalize(_fold_raw(p['branch3x3dbl_3a'])),
            branch3x3dbl_3b=_finalize(_fold_raw(p['branch3x3dbl_3b'])),
            branch_pool=_finalize(_fold_raw(p['branch_pool'])))
    for name in ('Mixed_7b', 'Mixed_7c'):
        FP[name] = fold_e(P[name])
    return FP


# ----------------------------------------------------------------------------
# Inception block forwards (fused same-input 1x1 branches)
# ----------------------------------------------------------------------------
def inception_a_fwd(x, p):
    b1, b5, bd = conv1x1_fused(x, p['fused_in'])
    b5 = conv_bn_relu(b5, p['branch5x5_2'], padding=(2, 2))
    bd = conv_bn_relu(bd, p['branch3x3dbl_2'], padding=(1, 1))
    bd = conv_bn_relu(bd, p['branch3x3dbl_3'], padding=(1, 1))
    bp = conv_bn_relu(avg_pool_3x3_s1_p1(x), p['branch_pool'])
    return jnp.concatenate([b1, b5, bd, bp], axis=-1)


def inception_b_fwd(x, p):
    b3 = conv_bn_relu(x, p['branch3x3'], stride=(2, 2))
    bd = conv_bn_relu(x, p['branch3x3dbl_1'])
    bd = conv_bn_relu(bd, p['branch3x3dbl_2'], padding=(1, 1))
    bd = conv_bn_relu(bd, p['branch3x3dbl_3'], stride=(2, 2))
    bp = max_pool_3x3_s2(x)
    return jnp.concatenate([b3, bd, bp], axis=-1)


def inception_c_fwd(x, p):
    b1, b7, bd = conv1x1_fused(x, p['fused_in'])
    b7 = conv_bn_relu(b7, p['branch7x7_2'], padding=(0, 3))
    b7 = conv_bn_relu(b7, p['branch7x7_3'], padding=(3, 0))
    bd = conv_bn_relu(bd, p['branch7x7dbl_2'], padding=(3, 0))
    bd = conv_bn_relu(bd, p['branch7x7dbl_3'], padding=(0, 3))
    bd = conv_bn_relu(bd, p['branch7x7dbl_4'], padding=(3, 0))
    bd = conv_bn_relu(bd, p['branch7x7dbl_5'], padding=(0, 3))
    bp = conv_bn_relu(avg_pool_3x3_s1_p1(x), p['branch_pool'])
    return jnp.concatenate([b1, b7, bd, bp], axis=-1)


def inception_d_fwd(x, p):
    b3, b7 = conv1x1_fused(x, p['fused_in'])
    b3 = conv_bn_relu(b3, p['branch3x3_2'], stride=(2, 2))
    b7 = conv_bn_relu(b7, p['branch7x7x3_2'], padding=(0, 3))
    b7 = conv_bn_relu(b7, p['branch7x7x3_3'], padding=(3, 0))
    b7 = conv_bn_relu(b7, p['branch7x7x3_4'], stride=(2, 2))
    bp = max_pool_3x3_s2(x)
    return jnp.concatenate([b3, b7, bp], axis=-1)


def inception_e_fwd(x, p):
    b1, b3, bd = conv1x1_fused(x, p['fused_in'])
    b3 = jnp.concatenate([
        conv_bn_relu(b3, p['branch3x3_2a'], padding=(0, 1)),
        conv_bn_relu(b3, p['branch3x3_2b'], padding=(1, 0))], axis=-1)
    bd = conv_bn_relu(bd, p['branch3x3dbl_2'], padding=(1, 1))
    bd = jnp.concatenate([
        conv_bn_relu(bd, p['branch3x3dbl_3a'], padding=(0, 1)),
        conv_bn_relu(bd, p['branch3x3dbl_3b'], padding=(1, 0))], axis=-1)
    bp = conv_bn_relu(avg_pool_3x3_s1_p1(x), p['branch_pool'])
    return jnp.concatenate([b1, b3, bd, bp], axis=-1)


def wrapnet_forward(x_nchw, P):
    """WrapNet.forward: InceptionV3 with the output head deleted -> (N, 2048)."""
    x = jnp.transpose(x_nchw, (0, 2, 3, 1))           # NCHW -> NHWC
    x = conv_bn_relu(x, P['Conv2d_1a_3x3'], stride=(2, 2))
    x = conv_bn_relu(x, P['Conv2d_2a_3x3'])
    x = conv_bn_relu(x, P['Conv2d_2b_3x3'], padding=(1, 1))
    x = max_pool_3x3_s2(x)
    x = conv_bn_relu(x, P['Conv2d_3b_1x1'])
    x = conv_bn_relu(x, P['Conv2d_4a_3x3'])
    x = max_pool_3x3_s2(x)
    x = inception_a_fwd(x, P['Mixed_5b'])
    x = inception_a_fwd(x, P['Mixed_5c'])
    x = inception_a_fwd(x, P['Mixed_5d'])
    x = inception_b_fwd(x, P['Mixed_6a'])
    x = inception_c_fwd(x, P['Mixed_6b'])
    x = inception_c_fwd(x, P['Mixed_6c'])
    x = inception_c_fwd(x, P['Mixed_6d'])
    x = inception_c_fwd(x, P['Mixed_6e'])
    x = inception_d_fwd(x, P['Mixed_7a'])
    x = inception_e_fwd(x, P['Mixed_7b'])
    x = inception_e_fwd(x, P['Mixed_7c'])
    # adaptive avg-pool to 1x1; dropout is identity in eval; head deleted.
    return global_avg_pool(x)                         # (N, 2048)


if __name__ == "__main__":
    key = jax.random.PRNGKey(0)
    pkey, xkey = jax.random.split(key)
    raw_params = make_inception_params(pkey)
    params = fold_inception_params(raw_params)        # one-time fold/pad/bf16
    # Smallest spatial size that survives InceptionV3's downsampling chain is 75.
    x = jax.random.normal(xkey, (2, 3, 75, 75), jnp.float32)   # NCHW, PyTorch-style
    y = wrapnet_forward(x, params)
    y = jax.block_until_ready(y)
    assert y.shape == (2, 2048), y.shape
    assert bool(jnp.all(jnp.isfinite(y)))
    print("KERNEL_OK")
</pallas_src>

<mosaic_0001>
module attributes {stable_mosaic.version = 11 : i64} {
  func.func @_mm_kernel(%arg0: i32, %arg1: i32, %arg2: memref<256x32xbf16, #tpu.memory_space<vmem>>, %arg3: memref<32x128xbf16, #tpu.memory_space<vmem>>, %arg4: memref<1x128xf32, #tpu.memory_space<vmem>>, %arg5: memref<256x128xf32, #tpu.memory_space<vmem>>) attributes {dimension_semantics = [#tpu.dimension_semantics<parallel>, #tpu.dimension_semantics<parallel>], iteration_bounds = array<i64: 11, 1>, scalar_prefetch = 0 : i64, scratch_operands = 0 : i64, tpu.core_type = #tpu.core_type<tc>, window_params = [{transform_indices = @transform_0, window_bounds = array<i64: 256, 32>}, {transform_indices = @transform_1, window_bounds = array<i64: 32, 128>}, {transform_indices = @transform_2, window_bounds = array<i64: 1, 128>}, {transform_indices = @transform_3, window_bounds = array<i64: 256, 128>}]} {
    %c0 = arith.constant 0 : index
    %c0_0 = arith.constant 0 : index
    %0 = vector.load %arg2[%c0, %c0_0] : memref<256x32xbf16, #tpu.memory_space<vmem>>, vector<256x32xbf16>
    %c0_1 = arith.constant 0 : index
    %c0_2 = arith.constant 0 : index
    %1 = vector.load %arg3[%c0_1, %c0_2] : memref<32x128xbf16, #tpu.memory_space<vmem>>, vector<32x128xbf16>
    %cst = arith.constant dense<0.000000e+00> : vector<256x128xf32>
    %2 = tpu.matmul %0, %1, %cst {dimension_numbers = #tpu.dot_dimension_numbers<[1], [0], [0], [1], [0, 0, 1, 1], [], []>} : vector<256x32xbf16>, vector<32x128xbf16>, vector<256x128xf32> -> vector<256x128xf32>
    %c0_3 = arith.constant 0 : index
    %c0_4 = arith.constant 0 : index
    %3 = vector.load %arg4[%c0_3, %c0_4] : memref<1x128xf32, #tpu.memory_space<vmem>>, vector<1x128xf32>
    %4 = vector.broadcast %3 : vector<1x128xf32> to vector<256x128xf32>
    %5 = arith.addf %2, %4 : vector<256x128xf32>
    %cst_5 = arith.constant 0.000000e+00 : f32
    %6 = vector.broadcast %cst_5 : f32 to vector<256x128xf32>
    %7 = arith.maximumf %5, %6 : vector<256x128xf32>
    %c0_6 = arith.constant 0 : index
    %c0_7 = arith.constant 0 : index
    %8 = vector.load %arg5[%c0_6, %c0_7] : memref<256x128xf32, #tpu.memory_space<vmem>>, vector<256x128xf32>
    tpu.vector_store %arg5[%c0_6, %c0_7], %7 {strides = array<i32>} : memref<256x128xf32, #tpu.memory_space<vmem>>, vector<256x128xf32>,
    return
  }
  func.func @transform_0(%arg0: i32, %arg1: i32) -> (i32, i32) {
    %c0_i32 = arith.constant 0 : i32
    %c0_i32_0 = arith.constant 0 : i32
    return %arg0, %c0_i32 : i32, i32
  }
  func.func @transform_1(%arg0: i32, %arg1: i32) -> (i32, i32) {
    %c0_i32 = arith.constant 0 : i32
    %c0_i32_0 = arith.constant 0 : i32
    return %c0_i32, %arg1 : i32, i32
  }
  func.func @transform_2(%arg0: i32, %arg1: i32) -> (i32, i32) {
    %c0_i32 = arith.constant 0 : i32
    %c0_i32_0 = arith.constant 0 : i32
    return %c0_i32, %arg1 : i32, i32
  }
  func.func @transform_3(%arg0: i32, %arg1: i32) -> (i32, i32) {
    %c0_i32 = arith.constant 0 : i32
    return %arg0, %arg1 : i32, i32
  }
}

</mosaic_0001>

<llo_original>
// kernel: tpu_custom_call.1
$region0: #{tpu_custom_call.1}
  #allocation0 [shape = 'u32[]', space=smem, size = 0x4, offset = 0x4, fixed_abs, tag = 'smem constant byte address 0x4 - core index']
  #allocation1 [shape = 'u32[144,128]{1,0:T(1,128)}', space=vmem, size = 0x12000, scoped, tag = 'internal scratch']
  %s0 = inlined_call_operand.vmem [shape: bf16[2816,32], index: 0, kind: input, shape index: {}]
  %s1 = inlined_call_operand.hbm [shape: bf16[32,128], index: 1, kind: input, shape index: {}]
  %s2 = inlined_call_operand.hbm [shape: f32[1,128], index: 2, kind: input, shape index: {}]
  %s3 = inlined_call_operand.hbm [shape: f32[2816,128], index: 3, kind: output, shape index: {}]
  %s4 = sld [smem:[#allocation0]]
  $region53: #{tpu_custom_call.1} parent=0
    _
  %s6 = ssub.s32 1, %s4
  %s7 = scalar_select 0, %s6, %s4
  $region1: #{tpu_custom_call.1} parent=0
    #allocation2 [shape = 'u8[8192]{0}', space=vmem, size = 0x2000, scoped, tag = 'input window, operand 1, single buffered']
    #allocation3 [shape = 's32[2]{0}', space=sflag, size = 0x8, scoped, tag = 'scoped memory for tpu_custom_call.1']
    #allocation4 [shape = 's32[2]{0}', space=sflag, size = 0x8, scoped, tag = 'scoped memory for tpu_custom_call.1']
    #allocation5 [shape = 'u8[512]{0}', space=vmem, size = 0x400, scoped, tag = 'input window, operand 2, single buffered']
    #allocation6 [shape = 's32[1]{0}', space=sflag, size = 0x4, scoped, tag = 'scoped memory for tpu_custom_call.1']
    #allocation7 [shape = 'u8[262144]{0}', space=vmem, size = 0x40000, scoped, tag = 'output window, operand 0']
    %8 = vsyncpa [#allocation3], 0
    %9 = vsyncpa [#allocation6], 0
    %10 = vsyncpa [#allocation4], 0
    %s11 = scalar_lea.sflag [#allocation4], 1
    %12 = vsyncpa %s11, 0
    loop: start=0, step=1, limit=13
    $region2: #{tpu_custom_call.1} parent=1 // loop_pre_header
      _
    $region3: #{tpu_custom_call.1} parent=1 // loop_header
      %s14 = sphi 0, %s18
      %p15 = scmp.ge.s32.totalorder %s14, 13
      %s21 = sphi 0, %s33
      %s22 = sphi 0, %s29
      %s23 = sphi 0, %s21
      %s24 = sphi 0, %s22
      %s25 = sphi 0, %s23
      %s26 = sphi 0, %s24
      %s36 = sphi 0, %s38
      %s39 = sphi 0, %s36
      %s40 = sphi 0, %s39
      %s56 = sphi 0, %s40
      %s62 = sphi 0, %s64
      %s65 = sphi 0, %s62
      %s66 = sphi 0, %s65
      %s82 = sphi 0, %s66
      %s88 = sphi 0, %s90
      %s91 = sphi 0, %s88
      %s92 = sphi 0, %s91
      %s108 = sphi 0, %s92
      %s116 = sphi 0, %s118
      %s119 = sphi 0, %s116
      %s120 = sphi 0, %s119
      %s136 = sphi 0, %s120
    $region4: #{tpu_custom_call.1} parent=1 // loop_header_branch
      %17 = sbr.rel (%p15) target = $region8
    $region5: #{tpu_custom_call.1} parent=1 // loop_body
      %s19 = ssub.s32 %s14, 1
      %s20 = ssub.s32 %s14, 2
      %s27 = sadd.s32 1, %s22
      %p28 = scmp.ge.s32.totalorder %s27, 1
      %s29 = scalar_select %p28, 0, %s27
      %s30 = sadd.s32 1, %s21
      %s31 = scalar_select %p28, %s30, %s21
      %p32 = scmp.ge.s32.totalorder %s31, 11
      %s33 = scalar_select %p32, 0, %s31
      %s34 = ssub.s32 %s21, %s33
      %p35 = scmp.eq.s32.totalorder %s34, 0
      %s37 = sadd.s32 %s36, 1
      %s38 = scalar_select %p35, %s36, %s37
      %p41 = pneg %p35
      %p42 = scmp.eq.s32.totalorder %s14, 10
      %p43 = por %p41, %p42
      %p44 = scmp.ne.s32.totalorder %s36, %s39
      %p45 = scmp.eq.s32.totalorder %s14, 0
      %p46 = por %p44, %p45
      %p47 = scmp.ne.s32.totalorder %s36, %s39
      %p48 = scmp.eq.s32.totalorder %s19, 10
      %p49 = por %p47, %p48
      %p50 = scmp.ne.s32.totalorder %s39, %s40
      %p51 = scmp.eq.s32.totalorder %s19, 0
      %p52 = por %p50, %p51
      %p53 = scmp.ne.s32.totalorder %s39, %s40
      %p54 = scmp.eq.s32.totalorder %s20, 10
      %p55 = por %p53, %p54
      %p57 = scmp.ne.s32.totalorder %s40, %s56
      %p58 = scmp.eq.s32.totalorder %s20, 0
      %p59 = por %p57, %p58
      %s60 = ssub.s32 %s22, %s29
      %p61 = scmp.eq.s32.totalorder %s60, 0
      %s63 = sadd.s32 %s62, 1
      %s64 = scalar_select %p61, %s62, %s63
      %p67 = pneg %p61
      %p68 = scmp.eq.s32.totalorder %s14, 10
      %p69 = por %p67, %p68
      %p70 = scmp.ne.s32.totalorder %s62, %s65
      %p71 = scmp.eq.s32.totalorder %s14, 0
      %p72 = por %p70, %p71
      %p73 = scmp.ne.s32.totalorder %s62, %s65
      %p74 = scmp.eq.s32.totalorder %s19, 10
      %p75 = por %p73, %p74
      %p76 = scmp.ne.s32.totalorder %s65, %s66
      %p77 = scmp.eq.s32.totalorder %s19, 0
      %p78 = por %p76, %p77
      %p79 = scmp.ne.s32.totalorder %s65, %s66
      %p80 = scmp.eq.s32.totalorder %s20, 10
      %p81 = por %p79, %p80
      %p83 = scmp.ne.s32.totalorder %s66, %s82
      %p84 = scmp.eq.s32.totalorder %s20, 0
      %p85 = por %p83, %p84
      %s86 = ssub.s32 %s22, %s29
      %p87 = scmp.eq.s32.totalorder %s86, 0
      %s89 = sadd.s32 %s88, 1
      %s90 = scalar_select %p87, %s88, %s89
      %p93 = pneg %p87
      %p94 = scmp.eq.s32.totalorder %s14, 10
      %p95 = por %p93, %p94
      %p96 = scmp.ne.s32.totalorder %s88, %s91
      %p97 = scmp.eq.s32.totalorder %s14, 0
      %p98 = por %p96, %p97
      %p99 = scmp.ne.s32.totalorder %s88, %s91
      %p100 = scmp.eq.s32.totalorder %s19, 10
      %p101 = por %p99, %p100
      %p102 = scmp.ne.s32.totalorder %s91, %s92
      %p103 = scmp.eq.s32.totalorder %s19, 0
      %p104 = por %p102, %p103
      %p105 = scmp.ne.s32.totalorder %s91, %s92
      %p106 = scmp.eq.s32.totalorder %s20, 10
      %p107 = por %p105, %p106
      %p109 = scmp.ne.s32.totalorder %s92, %s108
      %p110 = scmp.eq.s32.totalorder %s20, 0
      %p111 = por %p109, %p110
      %s112 = ssub.s32 %s21, %s33
      %s113 = ssub.s32 %s22, %s29
      %s114 = sor.u32 %s112, %s113
      %p115 = scmp.eq.s32.totalorder %s114, 0
      %s117 = sadd.s32 %s116, 1
      %s118 = scalar_select %p115, %s116, %s117
      %p121 = pneg %p115
      %p122 = scmp.eq.s32.totalorder %s14, 10
      %p123 = por %p121, %p122
      %p124 = scmp.ne.s32.totalorder %s116, %s119
      %p125 = scmp.eq.s32.totalorder %s14, 0
      %p126 = por %p124, %p125
      %p127 = scmp.ne.s32.totalorder %s116, %s119
      %p128 = scmp.eq.s32.totalorder %s19, 10
      %p129 = por %p127, %p128
      %p130 = scmp.ne.s32.totalorder %s119, %s120
      %p131 = scmp.eq.s32.totalorder %s19, 0
      %p132 = por %p130, %p131
      %p133 = scmp.ne.s32.totalorder %s119, %s120
      %p134 = scmp.eq.s32.totalorder %s20, 10
      %p135 = por %p133, %p134
      %p137 = scmp.ne.s32.totalorder %s120, %s136
      %p138 = scmp.eq.s32.totalorder %s20, 0
      %p139 = por %p137, %p138
      %p140 = scmp.le.s32.totalorder 1, %s14
      %p141 = scmp.lt.s32.totalorder %s14, 12
      %p142 = pnand %p140, %p141
      %p143 = pneg %p142
      // Predicated region
      $region9: #{tpu_custom_call.1} parent=5 // pred_check
        _
      $region10: #{tpu_custom_call.1} parent=5 // pred_check_branch
        %145 = sbr.rel (%p142) target = $region12
      $region11: #{tpu_custom_call.1} parent=5 // pred_region
        %s146 = ssub.s32 %s14, 1
        // Predicated region
        $region13: #{tpu_custom_call.1} parent=11 // pred_check
          %p147 = pneg %p78
        $region14: #{tpu_custom_call.1} parent=11 // pred_check_branch
          %149 = sbr.rel (%p147) target = $region16
        $region15: #{tpu_custom_call.1} parent=11 // pred_region
          %s151 = ssub.s32 256, 256
          %152 = vsyncadd [#allocation3], %s151
          %s153 = smul.addr %s24, 64
          %s154 = scalar_lea.hbm %s1, %s153
          %s155 = sshll.u32 [#allocation2], 4
          %s156 = int_to_ptr.vmem [resolvable:$true] %s155
          %161 = dma.hbm_to_vmem [thread:$0]  %s154, 256, %s156, [#allocation3], 64, 64, 4
        $region16: #{tpu_custom_call.1} parent=11 // pred_fallthru
          _
        // Predicated region
        $region17: #{tpu_custom_call.1} parent=11 // pred_check
          %p162 = pneg %p104
        $region18: #{tpu_custom_call.1} parent=11 // pred_check_branch
          %164 = sbr.rel (%p162) target = $region20
        $region19: #{tpu_custom_call.1} parent=11 // pred_region
          %s166 = ssub.s32 16, 16
          %167 = vsyncadd [#allocation6], %s166
          %s168 = smul.addr %s24, 16
          %s169 = scalar_lea.hbm %s2, %s168
          %s171 = sshll.u32 [#allocation5], 4
          %s172 = int_to_ptr.vmem [resolvable:$true] %s171
          %174 = dma.hbm_to_vmem [thread:$0]  %s169, 16, %s172, [#allocation6]
        $region20: #{tpu_custom_call.1} parent=11 // pred_fallthru
          _
      $region12: #{tpu_custom_call.1} parent=5 // pred_fallthru
        _
      %p175 = scmp.lt.s32.totalorder %s14, 11
      // Predicated region
      $region21: #{tpu_custom_call.1} parent=5 // pred_check
        %p176 = pneg %p175
      $region22: #{tpu_custom_call.1} parent=5 // pred_check_branch
        %178 = sbr.rel (%p176) target = $region24
      $region23: #{tpu_custom_call.1} parent=5 // pred_region
        // Predicated region
        $region25: #{tpu_custom_call.1} parent=23 // pred_check
          %p179 = pneg %p46
        $region26: #{tpu_custom_call.1} parent=23 // pred_check_branch
          %181 = sbr.rel (%p179) target = $region28
        $region27: #{tpu_custom_call.1} parent=23 // pred_region
          %s182 = smul.u32 32, %s21
          %p183 = scmp.lt.s32.totalorder %s182, 351
          %s184 = scalar_select %p183, %s182, 351
          %s185 = smul.addr %s184, 4
          %s186 = scalar_lea.vmem %s0, %s185
          %s187 = smul.u32 32, %s21
        $region28: #{tpu_custom_call.1} parent=23 // pred_fallthru
          _
      $region24: #{tpu_custom_call.1} parent=5 // pred_fallthru
        _
      %p188 = scmp.le.s32.totalorder 1, %s14
      %p189 = scmp.lt.s32.totalorder %s14, 12
      %p190 = pnand %p188, %p189
      %p191 = pneg %p190
      // Predicated region
      $region29: #{tpu_custom_call.1} parent=5 // pred_check
        _
      $region30: #{tpu_custom_call.1} parent=5 // pred_check_branch
        %193 = sbr.rel (%p190) target = $region32
      $region31: #{tpu_custom_call.1} parent=5 // pred_region
        %s194 = ssub.s32 %s14, 1
        // Predicated region
        $region33: #{tpu_custom_call.1} parent=31 // pred_check
          %p195 = pneg %p78
        $region34: #{tpu_custom_call.1} parent=31 // pred_check_branch
          %197 = sbr.rel (%p195) target = $region36
        $region35: #{tpu_custom_call.1} parent=31 // pred_region
          %198 = dma.done [#allocation3], 256
        $region36: #{tpu_custom_call.1} parent=31 // pred_fallthru
          _
        // Predicated region
        $region37: #{tpu_custom_call.1} parent=31 // pred_check
          %p199 = pneg %p104
        $region38: #{tpu_custom_call.1} parent=31 // pred_check_branch
          %201 = sbr.rel (%p199) target = $region40
        $region39: #{tpu_custom_call.1} parent=31 // pred_region
          %202 = dma.done [#allocation6], 16
        $region40: #{tpu_custom_call.1} parent=31 // pred_fallthru
          _
        %s203 = smul.u32 32, %s23
        %p204 = scmp.lt.s32.totalorder %s203, 351
        %s205 = scalar_select %p204, %s203, 351
        %s206 = smul.addr %s205, 4
        %s207 = scalar_lea.vmem %s0, %s206
        %p208 = pneg %p52
        %p209 = pneg %p49
        %p210 = pneg %p78
        %p211 = pneg %p75
        %p212 = pneg %p104
        %p213 = pneg %p101
        %p214 = pneg %p132
        %p215 = pneg %p129
        %s216 = sand.u32 %s119, 1
        %s217 = scalar_lea.sflag [#allocation4], %s216
        %s218 = sand.u32 %s119, 1
        %s219 = smul.addr %s218, 256
        %s220 = scalar_lea.vmem [#allocation7], %s219
        %s221 = smul.u32 32, %s23
        %p222 = scmp.lt.s32.totalorder %s221, 351
        %s223 = scalar_select %p222, %s221, 351
        %s224 = smul.addr %s223, 4
        %s225 = scalar_lea.vmem %s0, %s224
        %s226 = smul.u32 32, %s23
        %s227 = smul.u32 32, %s23
        %v229 = vld [vmem:[%s225] sm:$0xf]
        %v230 = vld [vmem:[%s225 + $0x4] sm:$0xf]
        %v231 = vld [vmem:[%s225 + $0x8] sm:$0xf]
        %v232 = vld [vmem:[%s225 + $0xc] sm:$0xf]
        %v233 = vld [vmem:[%s225 + $0x10] sm:$0xf]
        %v234 = vld [vmem:[%s225 + $0x14] sm:$0xf]
        %v235 = vld [vmem:[%s225 + $0x18] sm:$0xf]
        %v236 = vld [vmem:[%s225 + $0x1c] sm:$0xf]
        %v237 = vld [vmem:[%s225 + $0x20] sm:$0xf]
        %v238 = vld [vmem:[%s225 + $0x24] sm:$0xf]
        %v239 = vld [vmem:[%s225 + $0x28] sm:$0xf]
        %v240 = vld [vmem:[%s225 + $0x2c] sm:$0xf]
        %v241 = vld [vmem:[%s225 + $0x30] sm:$0xf]
        %v242 = vld [vmem:[%s225 + $0x34] sm:$0xf]
        %v243 = vld [vmem:[%s225 + $0x38] sm:$0xf]
        %v244 = vld [vmem:[%s225 + $0x3c] sm:$0xf]
        %v245 = vld [vmem:[%s225 + $0x40] sm:$0xf]
        %v246 = vld [vmem:[%s225 + $0x44] sm:$0xf]
        %v247 = vld [vmem:[%s225 + $0x48] sm:$0xf]
        %v248 = vld [vmem:[%s225 + $0x4c] sm:$0xf]
        %v249 = vld [vmem:[%s225 + $0x50] sm:$0xf]
        %v250 = vld [vmem:[%s225 + $0x54] sm:$0xf]
        %v251 = vld [vmem:[%s225 + $0x58] sm:$0xf]
        %v252 = vld [vmem:[%s225 + $0x5c] sm:$0xf]
        %v253 = vld [vmem:[%s225 + $0x60] sm:$0xf]
        %v254 = vld [vmem:[%s225 + $0x64] sm:$0xf]
        %v255 = vld [vmem:[%s225 + $0x68] sm:$0xf]
        %v256 = vld [vmem:[%s225 + $0x6c] sm:$0xf]
        %v257 = vld [vmem:[%s225 + $0x70] sm:$0xf]
        %v258 = vld [vmem:[%s225 + $0x74] sm:$0xf]
        %v259 = vld [vmem:[%s225 + $0x78] sm:$0xf]
        %v260 = vld [vmem:[%s225 + $0x7c] sm:$0xf]
        %v261 = vld [vmem:[#allocation2] sm:$0xf]
        %v262 = vld [vmem:[#allocation2 + $0x4] sm:$0xf]
        %v263 = vld [vmem:[#allocation2 + $0x8] sm:$0xf]
        %v264 = vld [vmem:[#allocation2 + $0xc] sm:$0xf]
        %v265 = vld [vmem:[#allocation5] sm:$0x1]
        %v267 = vlaneseq
        %v268 = vshrl.u32 %v267, 7
        %v269 = vsub.s32 0, %v268
        %v270 = vrot.slane %v265, %v269
        %v304 = vunpack.c.l.b16 %v229
        %v305 = vunpack.c.l.b16 %v230
        %v306 = vunpack.c.l.b16 %v231
        %v307 = vunpack.c.l.b16 %v232
        %v308 = vunpack.c.l.b16 %v233
        %v309 = vunpack.c.l.b16 %v234
        %v310 = vunpack.c.l.b16 %v235
        %v311 = vunpack.c.l.b16 %v236
        %v312 = vunpack.c.l.b16 %v237
        %v313 = vunpack.c.l.b16 %v238
        %v314 = vunpack.c.l.b16 %v239
        %v315 = vunpack.c.l.b16 %v240
        %v316 = vunpack.c.l.b16 %v241
        %v317 = vunpack.c.l.b16 %v242
        %v318 = vunpack.c.l.b16 %v243
        %v319 = vunpack.c.l.b16 %v244
        %v320 = vunpack.c.l.b16 %v245
        %v321 = vunpack.c.l.b16 %v246
        %v322 = vunpack.c.l.b16 %v247
        %v323 = vunpack.c.l.b16 %v248
        %v324 = vunpack.c.l.b16 %v249
        %v325 = vunpack.c.l.b16 %v250
        %v326 = vunpack.c.l.b16 %v251
        %v327 = vunpack.c.l.b16 %v252
        %v328 = vunpack.c.l.b16 %v253
        %v329 = vunpack.c.l.b16 %v254
        %v330 = vunpack.c.l.b16 %v255
        %v331 = vunpack.c.l.b16 %v256
        %v332 = vunpack.c.l.b16 %v257
        %v333 = vunpack.c.l.b16 %v258
        %v334 = vunpack.c.l.b16 %v259
        %v335 = vunpack.c.l.b16 %v260
        %v336 = vpack.c.b16 %v305, %v304
        %v337 = vpack.c.b16 %v307, %v306
        %v338 = vpack.c.b16 %v309, %v308
        %v339 = vpack.c.b16 %v311, %v310
        %v340 = vpack.c.b16 %v313, %v312
        %v341 = vpack.c.b16 %v315, %v314
        %v342 = vpack.c.b16 %v317, %v316
        %v343 = vpack.c.b16 %v319, %v318
        %v344 = vpack.c.b16 %v321, %v320
        %v345 = vpack.c.b16 %v323, %v322
        %v346 = vpack.c.b16 %v325, %v324
        %v347 = vpack.c.b16 %v327, %v326
        %v348 = vpack.c.b16 %v329, %v328
        %v349 = vpack.c.b16 %v331, %v330
        %v350 = vpack.c.b16 %v333, %v332
        %v351 = vpack.c.b16 %v335, %v334
        %v356 = vunpack.c.l.b16 %v261
        %v357 = vunpack.c.l.b16 %v262
        %v358 = vunpack.c.l.b16 %v263
        %v359 = vunpack.c.l.b16 %v264
        %v360 = vpack.c.b16 %v357, %v356
        %v361 = vpack.c.b16 %v359, %v358
        %vm364 = vcmask 261120
        %v366 = vsel %vm364, %v336, 0
        %v369 = vsel %vm364, %v337, 0
        %v372 = vsel %vm364, %v338, 0
        %v375 = vsel %vm364, %v339, 0
        %v378 = vsel %vm364, %v340, 0
        %v381 = vsel %vm364, %v341, 0
        %v384 = vsel %vm364, %v342, 0
        %v387 = vsel %vm364, %v343, 0
        %v390 = vsel %vm364, %v344, 0
        %v393 = vsel %vm364, %v345, 0
        %v396 = vsel %vm364, %v346, 0
        %v399 = vsel %vm364, %v347, 0
        %v402 = vsel %vm364, %v348, 0
        %v405 = vsel %vm364, %v349, 0
        %v408 = vsel %vm364, %v350, 0
        %v411 = vsel %vm364, %v351, 0
        %413 = vmatprep.subr.bf16.mxu0 0
        %414 = vmatpush1.bf16.msra.mxu0 %v360
        %415 = vmatprep.subr.bf16.mxu0 0
        %416 = vmatpush1.bf16.msra.mxu0 %v361
        %417 = vmatprep.subr.bf16.mxu0 0
        %418 = vmatpush1.bf16.msra.mxu0 0
        %419 = vmatprep.subr.bf16.mxu0 0
        %420 = vmatpush1.bf16.msra.mxu0 0
        %421 = vmatprep.subr.bf16.mxu0 0
        %422 = vmatpush1.bf16.msra.mxu0 0
        %423 = vmatprep.subr.bf16.mxu0 0
        %424 = vmatpush1.bf16.msra.mxu0 0
        %425 = vmatprep.subr.bf16.mxu0 0
        %426 = vmatpush1.bf16.msra.mxu0 0
        %427 = vmatprep.subr.bf16.mxu0 0
        %428 = vmatpush1.bf16.msra.mxu0 0
        %429 = vmatprep.subr.bf16.mxu0 0
        %430 = vmatpush1.bf16.msra.mxu0 0
        %431 = vmatprep.subr.bf16.mxu0 0
        %432 = vmatpush1.bf16.msra.mxu0 0
        %433 = vmatprep.subr.bf16.mxu0 0
        %434 = vmatpush1.bf16.msra.mxu0 0
        %435 = vmatprep.subr.bf16.mxu0 0
        %436 = vmatpush1.bf16.msra.mxu0 0
        %437 = vmatprep.subr.bf16.mxu0 0
        %438 = vmatpush1.bf16.msra.mxu0 0
        %439 = vmatprep.subr.bf16.mxu0 0
        %440 = vmatpush1.bf16.msra.mxu0 0
        %441 = vmatprep.subr.bf16.mxu0 0
        %442 = vmatpush1.bf16.msra.mxu0 0
        %443 = vmatprep.subr.bf16.mxu0 0
        %444 = vmatpush1.bf16.msra.mxu0 0
        %445 = vmatprep.mubr.bf16.mxu0 0
        %446 = vmatmul.mubr.bf16.gmra.mrb[0].mxu0 %v366
        %v447 = vpop.f32.mrb[0].mxu0
        %v448 = vadd.f32 %v270, %v447
        %v449 = vpop.f32.mrb[0].mxu0
        %v450 = vpop.f32.mrb[0].mxu0
        %v451 = vadd.f32 %v270, %v450
        %v452 = vpop.f32.mrb[0].mxu0
        %453 = vmatprep.mubr.bf16.mxu0 0
        %454 = vmatmul.mubr.bf16.gmra.mrb[0].mxu0 %v369
        %v455 = vpop.f32.mrb[0].mxu0
        %v456 = vadd.f32 %v270, %v455
        %v457 = vpop.f32.mrb[0].mxu0
        %v458 = vpop.f32.mrb[0].mxu0
        %v459 = vadd.f32 %v270, %v458
        %v460 = vpop.f32.mrb[0].mxu0
        %461 = vmatprep.mubr.bf16.mxu0 0
        %462 = vmatmul.mubr.bf16.gmra.mrb[0].mxu0 %v372
        %v463 = vpop.f32.mrb[0].mxu0
        %v464 = vadd.f32 %v270, %v463
        %v465 = vpop.f32.mrb[0].mxu0
        %v466 = vpop.f32.mrb[0].mxu0
        %v467 = vadd.f32 %v270, %v466
        %v468 = vpop.f32.mrb[0].mxu0
        %469 = vmatprep.mubr.bf16.mxu0 0
        %470 = vmatmul.mubr.bf16.gmra.mrb[0].mxu0 %v375
        %v471 = vpop.f32.mrb[0].mxu0
        %v472 = vadd.f32 %v270, %v471
        %v473 = vpop.f32.mrb[0].mxu0
        %v474 = vpop.f32.mrb[0].mxu0
        %v475 = vadd.f32 %v270, %v474
        %v476 = vpop.f32.mrb[0].mxu0
        %477 = vmatprep.mubr.bf16.mxu0 0
        %478 = vmatmul.mubr.bf16.gmra.mrb[0].mxu0 %v378
        %v479 = vpop.f32.mrb[0].mxu0
        %v480 = vadd.f32 %v270, %v479
        %v481 = vpop.f32.mrb[0].mxu0
        %v482 = vpop.f32.mrb[0].mxu0
        %v483 = vadd.f32 %v270, %v482
        %v484 = vpop.f32.mrb[0].mxu0
        %485 = vmatprep.mubr.bf16.mxu0 0
        %486 = vmatmul.mubr.bf16.gmra.mrb[0].mxu0 %v381
        %v487 = vpop.f32.mrb[0].mxu0
        %v488 = vadd.f32 %v270, %v487
        %v489 = vpop.f32.mrb[0].mxu0
        %v490 = vpop.f32.mrb[0].mxu0
        %v491 = vadd.f32 %v270, %v490
        %v492 = vpop.f32.mrb[0].mxu0
        %493 = vmatprep.mubr.bf16.mxu0 0
        %494 = vmatmul.mubr.bf16.gmra.mrb[0].mxu0 %v384
        %v495 = vpop.f32.mrb[0].mxu0
        %v496 = vadd.f32 %v270, %v495
        %v497 = vpop.f32.mrb[0].mxu0
        %v498 = vpop.f32.mrb[0].mxu0
        %v499 = vadd.f32 %v270, %v498
        %v500 = vpop.f32.mrb[0].mxu0
        %501 = vmatprep.mubr.bf16.mxu0 0
        %502 = vmatmul.mubr.bf16.gmra.mrb[0].mxu0 %v387
        %v503 = vpop.f32.mrb[0].mxu0
        %v504 = vadd.f32 %v270, %v503
        %v505 = vpop.f32.mrb[0].mxu0
        %v506 = vpop.f32.mrb[0].mxu0
        %v507 = vadd.f32 %v270, %v506
        %v508 = vpop.f32.mrb[0].mxu0
        %509 = vmatprep.mubr.bf16.mxu0 0
        %510 = vmatmul.mubr.bf16.gmra.mrb[0].mxu0 %v390
        %v511 = vpop.f32.mrb[0].mxu0
        %v512 = vadd.f32 %v270, %v511
        %v513 = vpop.f32.mrb[0].mxu0
        %v514 = vpop.f32.mrb[0].mxu0
        %v515 = vadd.f32 %v270, %v514
        %v516 = vpop.f32.mrb[0].mxu0
        %517 = vmatprep.mubr.bf16.mxu0 0
        %518 = vmatmul.mubr.bf16.gmra.mrb[0].mxu0 %v393
        %v519 = vpop.f32.mrb[0].mxu0
        %v520 = vadd.f32 %v270, %v519
        %v521 = vpop.f32.mrb[0].mxu0
        %v522 = vpop.f32.mrb[0].mxu0
        %v523 = vadd.f32 %v270, %v522
        %v524 = vpop.f32.mrb[0].mxu0
        %525 = vmatprep.mubr.bf16.mxu0 0
        %526 = vmatmul.mubr.bf16.gmra.mrb[0].mxu0 %v396
        %v527 = vpop.f32.mrb[0].mxu0
        %v528 = vadd.f32 %v270, %v527
        %v529 = vpop.f32.mrb[0].mxu0
        %v530 = vpop.f32.mrb[0].mxu0
        %v531 = vadd.f32 %v270, %v530
        %v532 = vpop.f32.mrb[0].mxu0
        %533 = vmatprep.mubr.bf16.mxu0 0
        %534 = vmatmul.mubr.bf16.gmra.mrb[0].mxu0 %v399
        %v535 = vpop.f32.mrb[0].mxu0
        %v536 = vadd.f32 %v270, %v535
        %v537 = vpop.f32.mrb[0].mxu0
        %v538 = vpop.f32.mrb[0].mxu0
        %v539 = vadd.f32 %v270, %v538
        %v540 = vpop.f32.mrb[0].mxu0
        %541 = vmatprep.mubr.bf16.mxu0 0
        %542 = vmatmul.mubr.bf16.gmra.mrb[0].mxu0 %v402
        %v543 = vpop.f32.mrb[0].mxu0
        %v544 = vadd.f32 %v270, %v543
        %v545 = vpop.f32.mrb[0].mxu0
        %v546 = vpop.f32.mrb[0].mxu0
        %v547 = vadd.f32 %v270, %v546
        %v548 = vpop.f32.mrb[0].mxu0
        %549 = vmatprep.mubr.bf16.mxu0 0
        %550 = vmatmul.mubr.bf16.gmra.mrb[0].mxu0 %v405
        %v551 = vpop.f32.mrb[0].mxu0
        %v552 = vadd.f32 %v270, %v551
        %v553 = vpop.f32.mrb[0].mxu0
        %v554 = vpop.f32.mrb[0].mxu0
        %v555 = vadd.f32 %v270, %v554
        %v556 = vpop.f32.mrb[0].mxu0
        %557 = vmatprep.mubr.bf16.mxu0 0
        %558 = vmatmul.mubr.bf16.gmra.mrb[0].mxu0 %v408
        %v559 = vpop.f32.mrb[0].mxu0
        %v560 = vadd.f32 %v270, %v559
        %v561 = vpop.f32.mrb[0].mxu0
        %v562 = vpop.f32.mrb[0].mxu0
        %v563 = vadd.f32 %v270, %v562
        %v564 = vpop.f32.mrb[0].mxu0
        %565 = vmatprep.mubr.bf16.mxu0 0
        %566 = vmatmul.mubr.bf16.gmra.mrb[0].mxu0 %v411
        %v567 = vpop.f32.mrb[0].mxu0
        %v568 = vadd.f32 %v270, %v567
        %v569 = vpop.f32.mrb[0].mxu0
        %v570 = vpop.f32.mrb[0].mxu0
        %v571 = vadd.f32 %v270, %v570
        %v572 = vpop.f32.mrb[0].mxu0
        %573 = vdwg.mxu0
        %v574 = vmax.f32 %v448, 0.0
        %v575 = vmax.f32 %v451, 0.0
        %v576 = vmax.f32 %v456, 0.0
        %v577 = vmax.f32 %v459, 0.0
        %v578 = vmax.f32 %v464, 0.0
        %v579 = vmax.f32 %v467, 0.0
        %v580 = vmax.f32 %v472, 0.0
        %v581 = vmax.f32 %v475, 0.0
        %v582 = vmax.f32 %v480, 0.0
        %v583 = vmax.f32 %v483, 0.0
        %v584 = vmax.f32 %v488, 0.0
        %v585 = vmax.f32 %v491, 0.0
        %v586 = vmax.f32 %v496, 0.0
        %v587 = vmax.f32 %v499, 0.0
        %v588 = vmax.f32 %v504, 0.0
        %v589 = vmax.f32 %v507, 0.0
        %v590 = vmax.f32 %v512, 0.0
        %v591 = vmax.f32 %v515, 0.0
        %v592 = vmax.f32 %v520, 0.0
        %v593 = vmax.f32 %v523, 0.0
        %v594 = vmax.f32 %v528, 0.0
        %v595 = vmax.f32 %v531, 0.0
        %v596 = vmax.f32 %v536, 0.0
        %v597 = vmax.f32 %v539, 0.0
        %v598 = vmax.f32 %v544, 0.0
        %v599 = vmax.f32 %v547, 0.0
        %v600 = vmax.f32 %v552, 0.0
        %v601 = vmax.f32 %v555, 0.0
        %v602 = vmax.f32 %v560, 0.0
        %v603 = vmax.f32 %v563, 0.0
        %v604 = vmax.f32 %v568, 0.0
        %v605 = vmax.f32 %v571, 0.0
        %606 = vst [vmem:[%s220] sm:$0xff] %v574
        %607 = vst [vmem:[%s220 + $0x8] sm:$0xff] %v575
        %608 = vst [vmem:[%s220 + $0x10] sm:$0xff] %v576
        %609 = vst [vmem:[%s220 + $0x18] sm:$0xff] %v577
        %610 = vst [vmem:[%s220 + $0x20] sm:$0xff] %v578
        %611 = vst [vmem:[%s220 + $0x28] sm:$0xff] %v579
        %612 = vst [vmem:[%s220 + $0x30] sm:$0xff] %v580
        %613 = vst [vmem:[%s220 + $0x38] sm:$0xff] %v581
        %614 = vst [vmem:[%s220 + $0x40] sm:$0xff] %v582
        %615 = vst [vmem:[%s220 + $0x48] sm:$0xff] %v583
        %616 = vst [vmem:[%s220 + $0x50] sm:$0xff] %v584
        %617 = vst [vmem:[%s220 + $0x58] sm:$0xff] %v585
        %618 = vst [vmem:[%s220 + $0x60] sm:$0xff] %v586
        %619 = vst [vmem:[%s220 + $0x68] sm:$0xff] %v587
        %620 = vst [vmem:[%s220 + $0x70] sm:$0xff] %v588
        %621 = vst [vmem:[%s220 + $0x78] sm:$0xff] %v589
        %622 = vst [vmem:[%s220 + $0x80] sm:$0xff] %v590
        %623 = vst [vmem:[%s220 + $0x88] sm:$0xff] %v591
        %624 = vst [vmem:[%s220 + $0x90] sm:$0xff] %v592
        %625 = vst [vmem:[%s220 + $0x98] sm:$0xff] %v593
        %626 = vst [vmem:[%s220 + $0xa0] sm:$0xff] %v594
        %627 = vst [vmem:[%s220 + $0xa8] sm:$0xff] %v595
        %628 = vst [vmem:[%s220 + $0xb0] sm:$0xff] %v596
        %629 = vst [vmem:[%s220 + $0xb8] sm:$0xff] %v597
        %630 = vst [vmem:[%s220 + $0xc0] sm:$0xff] %v598
        %631 = vst [vmem:[%s220 + $0xc8] sm:$0xff] %v599
        %632 = vst [vmem:[%s220 + $0xd0] sm:$0xff] %v600
        %633 = vst [vmem:[%s220 + $0xd8] sm:$0xff] %v601
        %634 = vst [vmem:[%s220 + $0xe0] sm:$0xff] %v602
        %635 = vst [vmem:[%s220 + $0xe8] sm:$0xff] %v603
        %636 = vst [vmem:[%s220 + $0xf0] sm:$0xff] %v604
        %637 = vst [vmem:[%s220 + $0xf8] sm:$0xff] %v605
        %s638 = sand.u32 %s119, 1
        %s639 = scalar_lea.sflag [#allocation4], %s638
        %s640 = sand.u32 %s119, 1
        %s641 = smul.addr %s640, 256
        %s642 = scalar_lea.vmem [#allocation7], %s641
        // Predicated region
        $region41: #{tpu_custom_call.1} parent=31 // pred_check
          %p643 = pneg %p129
        $region42: #{tpu_custom_call.1} parent=31 // pred_check_branch
          %645 = sbr.rel (%p643) target = $region44
        $region43: #{tpu_custom_call.1} parent=31 // pred_region
          %s646 = smul.u32 32, %s23
          %s648 = ssub.s32 4096, 4096
          %649 = vsyncadd %s639, %s648
          %s650 = sadd.s32 %s24, %s646
          %s651 = smul.addr %s650, 128
          %s652 = scalar_lea.hbm %s3, %s651
          %s653 = sshll.u32 %s642, 4
          %s654 = int_to_ptr.vmem [resolvable:$true] %s653
          %659 = dma.vmem_to_hbm [thread:$0]  %s654, 4096, %s652, %s639, 128, 128, 8
        $region44: #{tpu_custom_call.1} parent=31 // pred_fallthru
          _
      $region32: #{tpu_custom_call.1} parent=5 // pred_fallthru
        _
      %p660 = scmp.le.s32.totalorder 2, %s14
      // Predicated region
      $region45: #{tpu_custom_call.1} parent=5 // pred_check
        %p661 = pneg %p660
      $region46: #{tpu_custom_call.1} parent=5 // pred_check_branch
        %663 = sbr.rel (%p661) target = $region48
      $region47: #{tpu_custom_call.1} parent=5 // pred_region
        %s664 = ssub.s32 %s14, 2
        // Predicated region
        $region49: #{tpu_custom_call.1} parent=47 // pred_check
          %p665 = pneg %p135
        $region50: #{tpu_custom_call.1} parent=47 // pred_check_branch
          %667 = sbr.rel (%p665) target = $region52
        $region51: #{tpu_custom_call.1} parent=47 // pred_region
          %s668 = sand.u32 %s120, 1
          %s669 = scalar_lea.sflag [#allocation4], %s668
          %s670 = sand.u32 %s120, 1
          %s671 = smul.addr %s670, 256
          %s672 = scalar_lea.vmem [#allocation7], %s671
          %673 = dma.done %s669, 4096
        $region52: #{tpu_custom_call.1} parent=47 // pred_fallthru
          _
      $region48: #{tpu_custom_call.1} parent=5 // pred_fallthru
        _
    $region6: #{tpu_custom_call.1} parent=1 // loop_footer
      %s18 = sadd.s32 1, %s14
    $region7: #{tpu_custom_call.1} parent=1 // loop_footer_branch
      %13 = sbr.rel target = $region3
    $region8: #{tpu_custom_call.1} parent=1 // loop_exit
      _
    %674 = vsyncpa [#allocation3], 1
    %s675 = scalar_lea.sflag [#allocation3], 1
    %676 = vsyncpa %s675, 1
    %677 = vsyncpa [#allocation6], 1
    %678 = vsyncpa [#allocation4], 1
    %s679 = scalar_lea.sflag [#allocation4], 1
    %680 = vsyncpa %s679, 1

</llo_original>
